<compile_context>
chip_gen: v5e
topology: v5e:2x2
jax: 0.10.0
libtpu: 0.0.40
codegen_flags: <defaults>
</compile_context>

<pallas_src>
import numpy as np
import jax
import jax.numpy as jnp
from jax.experimental import pallas as pl
from jax.experimental.pallas import tpu as pltpu

N_CLASSES = 80
N_ANCHORS = 3
H, W = 13, 20                      # hardcoded in the PyTorch forward (view(..., 13, 20))
HW = H * W
STRIDE = 32                        # forward uses index [2] buffers -> stride-32 head
ANCHORS = [[12, 16], [19, 36], [40, 28], [36, 75], [76, 55],
           [72, 146], [142, 110], [192, 243], [459, 401]]
ANCH_MASK = [6, 7, 8]              # anch_masks[2]

_MASKED = np.array([ANCHORS[j] for j in ANCH_MASK], dtype=np.float32) / STRIDE
AW = tuple(float(v) for v in _MASKED[:, 0])   # anchor widths  / stride
AH = tuple(float(v) for v in _MASKED[:, 1])   # anchor heights / stride


def _yolo_pred_kernel(x_ref, o_ref):
    """x_ref: (B, 3, 8, HW)  (channels 0..3 = tx,ty,tw,th; 4..7 unused padding)
       o_ref: (4, B, 3, HW)  (px, py, pw, ph)."""
    x = x_ref[...].astype(jnp.float32)          # (B, 3, 8, HW)
    tx = x[:, :, 0, :]                          # (B, 3, HW)
    ty = x[:, :, 1, :]
    tw = x[:, :, 2, :]
    th = x[:, :, 3, :]

    shape = tx.shape
    # grid_x / grid_y from the fused (h*W + w) lane index (float floor-div is exact here).
    lane = jax.lax.broadcasted_iota(jnp.int32, shape, 2).astype(jnp.float32)
    gy = jnp.floor(lane * (1.0 / float(W)))
    gx = lane - gy * float(W)

    # per-anchor w/h from the anchor axis index and baked-in scalar constants.
    aidx = jax.lax.broadcasted_iota(jnp.int32, shape, 1)
    aw = jnp.where(aidx == 0, AW[0], jnp.where(aidx == 1, AW[1], AW[2]))
    ah = jnp.where(aidx == 0, AH[0], jnp.where(aidx == 1, AH[1], AH[2]))

    o_ref[0] = jax.nn.sigmoid(tx) + gx
    o_ref[1] = jax.nn.sigmoid(ty) + gy
    o_ref[2] = jnp.exp(tw) * aw
    o_ref[3] = jnp.exp(th) * ah


@jax.jit
def yolo_loss_forward(xin):
    """Equivalent of Yolo_loss.forward(xin) with labels=None -> pred (B, 3, 13, 20, 4)."""
    B = xin.shape[0]
    n_ch = 5 + N_CLASSES
    # Free view: (B, 255, 13, 20) -> (B, 3, 85, 260); the BlockSpec below picks channels 0:8.
    x_r = xin.reshape(B, N_ANCHORS, n_ch, HW)

    out4 = pl.pallas_call(
        _yolo_pred_kernel,
        out_shape=jax.ShapeDtypeStruct((4, B, N_ANCHORS, HW), jnp.float32),
        grid=(1,),
        in_specs=[
            # Only the first 8 of the 85 channels per anchor are DMA'd (block index 0).
            pl.BlockSpec((B, N_ANCHORS, 8, HW), lambda i: (0, 0, 0, 0)),
        ],
        out_specs=pl.BlockSpec((4, B, N_ANCHORS, HW), lambda i: (0, 0, 0, 0)),
        compiler_params=pltpu.CompilerParams(dimension_semantics=("arbitrary",)),
    )(x_r)

    # (4, B, 3, HW) -> (B, 3, H, W, 4): tiny transpose, left to (jitted) XLA.
    pred = jnp.transpose(out4.reshape(4, B, N_ANCHORS, H, W), (1, 2, 3, 4, 0))
    return pred


def _reference(x_np):
    """Pure-numpy replica of the PyTorch forward for verification."""
    B = x_np.shape[0]
    n_ch = 5 + N_CLASSES
    o = x_np.reshape(B, N_ANCHORS, n_ch, H, W).transpose(0, 1, 3, 4, 2)  # (B,3,H,W,85)
    gx = np.arange(W, dtype=np.float32)[None, None, None, :]
    gy = np.arange(H, dtype=np.float32)[None, None, :, None]
    aw = _MASKED[:, 0][None, :, None, None]
    ah = _MASKED[:, 1][None, :, None, None]
    sig = lambda v: 1.0 / (1.0 + np.exp(-v))
    px = sig(o[..., 0]) + gx
    py = sig(o[..., 1]) + gy
    pw = np.exp(o[..., 2]) * aw
    ph = np.exp(o[..., 3]) * ah
    return np.stack([px, py, pw, ph], axis=-1).astype(np.float32)


if __name__ == "__main__":
    key = jax.random.PRNGKey(0)
    B = 2
    x = jax.random.normal(key, (B, N_ANCHORS * (5 + N_CLASSES), H, W), dtype=jnp.float32)

    pred = jax.block_until_ready(yolo_loss_forward(x))

    assert pred.shape == (B, N_ANCHORS, H, W, 4), pred.shape
    ref = _reference(np.asarray(x))
    np.testing.assert_allclose(np.asarray(pred), ref, rtol=1e-5, atol=1e-4)
    print("KERNEL_OK")
</pallas_src>

<mosaic_0001>
module attributes {stable_mosaic.version = 11 : i64} {
  func.func @_yolo_pred_kernel(%arg0: i32, %arg1: memref<2x3x8x260xf32, #tpu.memory_space<vmem>>, %arg2: memref<4x2x3x260xf32, #tpu.memory_space<vmem>>) attributes {dimension_semantics = [#tpu.dimension_semantics<arbitrary>], iteration_bounds = array<i64: 1>, scalar_prefetch = 0 : i64, scratch_operands = 0 : i64, tpu.core_type = #tpu.core_type<tc>, window_params = [{transform_indices = @transform_0, window_bounds = array<i64: 2, 3, 8, 260>}, {pipeline_mode = #tpu.pipeline_mode<synchronous>, transform_indices = @transform_1, window_bounds = array<i64: 4, 2, 3, 260>}]} {
    %c0 = arith.constant 0 : index
    %c0_0 = arith.constant 0 : index
    %c0_1 = arith.constant 0 : index
    %c0_2 = arith.constant 0 : index
    %0 = vector.load %arg1[%c0, %c0_0, %c0_1, %c0_2] : memref<2x3x8x260xf32, #tpu.memory_space<vmem>>, vector<2x3x8x260xf32>
    %1 = vector.extract_strided_slice %0 {offsets = [0, 0, 0, 0], sizes = [2, 3, 1, 260], strides = [1, 1, 1, 1]} : vector<2x3x8x260xf32> to vector<2x3x1x260xf32>
    %2 = vector.shape_cast %1 : vector<2x3x1x260xf32> to vector<2x3x260xf32>
    %3 = vector.extract_strided_slice %0 {offsets = [0, 0, 1, 0], sizes = [2, 3, 1, 260], strides = [1, 1, 1, 1]} : vector<2x3x8x260xf32> to vector<2x3x1x260xf32>
    %4 = vector.shape_cast %3 : vector<2x3x1x260xf32> to vector<2x3x260xf32>
    %5 = vector.extract_strided_slice %0 {offsets = [0, 0, 2, 0], sizes = [2, 3, 1, 260], strides = [1, 1, 1, 1]} : vector<2x3x8x260xf32> to vector<2x3x1x260xf32>
    %6 = vector.shape_cast %5 : vector<2x3x1x260xf32> to vector<2x3x260xf32>
    %7 = vector.extract_strided_slice %0 {offsets = [0, 0, 3, 0], sizes = [2, 3, 1, 260], strides = [1, 1, 1, 1]} : vector<2x3x8x260xf32> to vector<2x3x1x260xf32>
    %8 = vector.shape_cast %7 : vector<2x3x1x260xf32> to vector<2x3x260xf32>
    %9 = tpu.iota {dimensions = array<i32: 2>} : vector<2x3x260xi32>
    %10 = arith.sitofp %9 : vector<2x3x260xi32> to vector<2x3x260xf32>
    %cst = arith.constant 5.000000e-02 : f32
    %11 = vector.broadcast %cst : f32 to vector<2x3x260xf32>
    %12 = arith.mulf %10, %11 : vector<2x3x260xf32>
    %13 = math.floor %12 : vector<2x3x260xf32>
    %cst_3 = arith.constant 2.000000e+01 : f32
    %14 = vector.broadcast %cst_3 : f32 to vector<2x3x260xf32>
    %15 = arith.mulf %13, %14 : vector<2x3x260xf32>
    %16 = arith.subf %10, %15 : vector<2x3x260xf32>
    %17 = tpu.iota {dimensions = array<i32: 1>} : vector<2x3x260xi32>
    %c0_i32 = arith.constant 0 : i32
    %18 = vector.broadcast %c0_i32 : i32 to vector<2x3x260xi32>
    %19 = arith.cmpi eq, %17, %18 : vector<2x3x260xi32>
    %c1_i32 = arith.constant 1 : i32
    %20 = vector.broadcast %c1_i32 : i32 to vector<2x3x260xi32>
    %21 = arith.cmpi eq, %17, %20 : vector<2x3x260xi32>
    %cst_4 = arith.constant 6.000000e+00 : f32
    %cst_5 = arith.constant 14.34375 : f32
    %22 = vector.broadcast %cst_4 : f32 to vector<2x3x260xf32>
    %23 = vector.broadcast %cst_5 : f32 to vector<2x3x260xf32>
    %24 = arith.select %21, %22, %23 : vector<2x3x260xi1>, vector<2x3x260xf32>
    %cst_6 = arith.constant 4.437500e+00 : f32
    %25 = vector.broadcast %cst_6 : f32 to vector<2x3x260xf32>
    %26 = arith.select %19, %25, %24 : vector<2x3x260xi1>, vector<2x3x260xf32>
    %c0_i32_7 = arith.constant 0 : i32
    %27 = vector.broadcast %c0_i32_7 : i32 to vector<2x3x260xi32>
    %28 = arith.cmpi eq, %17, %27 : vector<2x3x260xi32>
    %c1_i32_8 = arith.constant 1 : i32
    %29 = vector.broadcast %c1_i32_8 : i32 to vector<2x3x260xi32>
    %30 = arith.cmpi eq, %17, %29 : vector<2x3x260xi32>
    %cst_9 = arith.constant 7.593750e+00 : f32
    %cst_10 = arith.constant 12.53125 : f32
    %31 = vector.broadcast %cst_9 : f32 to vector<2x3x260xf32>
    %32 = vector.broadcast %cst_10 : f32 to vector<2x3x260xf32>
    %33 = arith.select %30, %31, %32 : vector<2x3x260xi1>, vector<2x3x260xf32>
    %cst_11 = arith.constant 3.437500e+00 : f32
    %34 = vector.broadcast %cst_11 : f32 to vector<2x3x260xf32>
    %35 = arith.select %28, %34, %33 : vector<2x3x260xi1>, vector<2x3x260xf32>
    %36 = arith.negf %2 : vector<2x3x260xf32>
    %37 = math.exp %36 : vector<2x3x260xf32>
    %cst_12 = arith.constant 1.000000e+00 : f32
    %38 = vector.broadcast %cst_12 : f32 to vector<2x3x260xf32>
    %39 = arith.addf %38, %37 : vector<2x3x260xf32>
    %40 = arith.divf %38, %39 : vector<2x3x260xf32>
    %41 = arith.addf %40, %16 : vector<2x3x260xf32>
    %c0_13 = arith.constant 0 : index
    %c0_14 = arith.constant 0 : index
    %c0_15 = arith.constant 0 : index
    %c0_16 = arith.constant 0 : index
    %42 = vector.load %arg2[%c0_13, %c0_14, %c0_15, %c0_16] : memref<4x2x3x260xf32, #tpu.memory_space<vmem>>, vector<1x2x3x260xf32>
    %43 = vector.shape_cast %42 : vector<1x2x3x260xf32> to vector<2x3x260xf32>
    %44 = vector.shape_cast %41 : vector<2x3x260xf32> to vector<1x2x3x260xf32>
    tpu.vector_store %arg2[%c0_13, %c0_14, %c0_15, %c0_16], %44 {strides = array<i32>} : memref<4x2x3x260xf32, #tpu.memory_space<vmem>>, vector<1x2x3x260xf32>,
    %45 = arith.negf %4 : vector<2x3x260xf32>
    %46 = math.exp %45 : vector<2x3x260xf32>
    %cst_17 = arith.constant 1.000000e+00 : f32
    %47 = vector.broadcast %cst_17 : f32 to vector<2x3x260xf32>
    %48 = arith.addf %47, %46 : vector<2x3x260xf32>
    %49 = arith.divf %47, %48 : vector<2x3x260xf32>
    %50 = arith.addf %49, %13 : vector<2x3x260xf32>
    %c1 = arith.constant 1 : index
    %c0_18 = arith.constant 0 : index
    %c0_19 = arith.constant 0 : index
    %c0_20 = arith.constant 0 : index
    %51 = vector.load %arg2[%c1, %c0_18, %c0_19, %c0_20] : memref<4x2x3x260xf32, #tpu.memory_space<vmem>>, vector<1x2x3x260xf32>
    %52 = vector.shape_cast %51 : vector<1x2x3x260xf32> to vector<2x3x260xf32>
    %53 = vector.shape_cast %50 : vector<2x3x260xf32> to vector<1x2x3x260xf32>
    tpu.vector_store %arg2[%c1, %c0_18, %c0_19, %c0_20], %53 {strides = array<i32>} : memref<4x2x3x260xf32, #tpu.memory_space<vmem>>, vector<1x2x3x260xf32>,
    %54 = math.exp %6 : vector<2x3x260xf32>
    %55 = arith.mulf %54, %26 : vector<2x3x260xf32>
    %c2 = arith.constant 2 : index
    %c0_21 = arith.constant 0 : index
    %c0_22 = arith.constant 0 : index
    %c0_23 = arith.constant 0 : index
    %56 = vector.load %arg2[%c2, %c0_21, %c0_22, %c0_23] : memref<4x2x3x260xf32, #tpu.memory_space<vmem>>, vector<1x2x3x260xf32>
    %57 = vector.shape_cast %56 : vector<1x2x3x260xf32> to vector<2x3x260xf32>
    %58 = vector.shape_cast %55 : vector<2x3x260xf32> to vector<1x2x3x260xf32>
    tpu.vector_store %arg2[%c2, %c0_21, %c0_22, %c0_23], %58 {strides = array<i32>} : memref<4x2x3x260xf32, #tpu.memory_space<vmem>>, vector<1x2x3x260xf32>,
    %59 = math.exp %8 : vector<2x3x260xf32>
    %60 = arith.mulf %59, %35 : vector<2x3x260xf32>
    %c3 = arith.constant 3 : index
    %c0_24 = arith.constant 0 : index
    %c0_25 = arith.constant 0 : index
    %c0_26 = arith.constant 0 : index
    %61 = vector.load %arg2[%c3, %c0_24, %c0_25, %c0_26] : memref<4x2x3x260xf32, #tpu.memory_space<vmem>>, vector<1x2x3x260xf32>
    %62 = vector.shape_cast %61 : vector<1x2x3x260xf32> to vector<2x3x260xf32>
    %63 = vector.shape_cast %60 : vector<2x3x260xf32> to vector<1x2x3x260xf32>
    tpu.vector_store %arg2[%c3, %c0_24, %c0_25, %c0_26], %63 {strides = array<i32>} : memref<4x2x3x260xf32, #tpu.memory_space<vmem>>, vector<1x2x3x260xf32>,
    return
  }
  func.func @transform_0(%arg0: i32) -> (i32, i32, i32, i32) {
    %c0_i32 = arith.constant 0 : i32
    %c0_i32_0 = arith.constant 0 : i32
    %c0_i32_1 = arith.constant 0 : i32
    %c0_i32_2 = arith.constant 0 : i32
    %c0_i32_3 = arith.constant 0 : i32
    return %c0_i32, %c0_i32_0, %c0_i32_1, %c0_i32_2 : i32, i32, i32, i32
  }
  func.func @transform_1(%arg0: i32) -> (i32, i32, i32, i32) {
    %c0_i32 = arith.constant 0 : i32
    %c0_i32_0 = arith.constant 0 : i32
    %c0_i32_1 = arith.constant 0 : i32
    %c0_i32_2 = arith.constant 0 : i32
    %c0_i32_3 = arith.constant 0 : i32
    return %c0_i32, %c0_i32_0, %c0_i32_1, %c0_i32_2 : i32, i32, i32, i32
  }
}

</mosaic_0001>

<llo_original>
// kernel: yolo_loss_forward.1
$region0: #{yolo_loss_forward.1}
  #allocation0 [shape = 'u32[]', space=smem, size = 0x4, offset = 0x4, fixed_abs, tag = 'smem constant byte address 0x4 - core index']
  #allocation1 [shape = 'u32[72,128]{1,0:T(1,128)}', space=vmem, size = 0x9000, scoped, tag = 'internal scratch']
  %s0 = inlined_call_operand.vmem [shape: f32[2,3,85,260], index: 0, kind: input, shape index: {}]
  %s1 = inlined_call_operand.vmem [shape: f32[4,2,3,260], index: 1, kind: output, shape index: {}]
  %s2 = sld [smem:[#allocation0]]
  $region37: #{yolo_loss_forward.1} parent=0
    _
  %s4 = ssub.s32 1, %s2
  %s5 = scalar_select 0, %s4, %s2
  $region1: #{yolo_loss_forward.1} parent=0
    #allocation2 [shape = 'u8[73728]{0}', space=vmem, size = 0x12000, scoped, tag = 'input window, operand 0, single buffered']
    // Predicated region
    $region2: #{yolo_loss_forward.1} parent=1 // pred_check
      _
    $region3: #{yolo_loss_forward.1} parent=1 // pred_check_branch
      %7 = sbr.rel (0) target = $region5
    $region4: #{yolo_loss_forward.1} parent=1 // pred_region
      // Predicated region
      $region6: #{yolo_loss_forward.1} parent=4 // pred_check
        _
      $region7: #{yolo_loss_forward.1} parent=4 // pred_check_branch
        %9 = sbr.rel (0) target = $region9
      $region8: #{yolo_loss_forward.1} parent=4 // pred_region
        // Predicated region
        $region10: #{yolo_loss_forward.1} parent=8 // pred_check
          _
        $region11: #{yolo_loss_forward.1} parent=8 // pred_check_branch
          %11 = sbr.rel (0) target = $region13
        $region12: #{yolo_loss_forward.1} parent=8 // pred_region
          loop: start=0, step=1, limit=1
          $region14: #{yolo_loss_forward.1} parent=12 // loop_pre_header
            _
          $region15: #{yolo_loss_forward.1} parent=12 // loop_header
            %s13 = sphi 0, %s17
            %p14 = scmp.ge.s32.totalorder %s13, 1
            %s18 = sphi %s0, %s0
            %s19 = sphi [#allocation2], [#allocation2]
          $region16: #{yolo_loss_forward.1} parent=12 // loop_header_branch
            %16 = sbr.rel (%p14) target = $region20
          $region17: #{yolo_loss_forward.1} parent=12 // loop_body
            %v20 = vld [vmem:[%s18] sm:$0xff]
            %21 = vst [vmem:[%s19] sm:$0xff] %v20
            %v22 = vld [vmem:[%s18 + $0x8] sm:$0xff]
            %23 = vst [vmem:[%s19 + $0x8] sm:$0xff] %v22
            %v24 = vld [vmem:[%s18 + $0x10] sm:$0xff]
            %25 = vst [vmem:[%s19 + $0x10] sm:$0xff] %v24
            %v26 = vld [vmem:[%s18 + $0x108] sm:$0xff]
            %27 = vst [vmem:[%s19 + $0x18] sm:$0xff] %v26
            %v28 = vld [vmem:[%s18 + $0x110] sm:$0xff]
            %29 = vst [vmem:[%s19 + $0x20] sm:$0xff] %v28
            %v30 = vld [vmem:[%s18 + $0x118] sm:$0xff]
            %31 = vst [vmem:[%s19 + $0x28] sm:$0xff] %v30
            %v32 = vld [vmem:[%s18 + $0x210] sm:$0xff]
            %33 = vst [vmem:[%s19 + $0x30] sm:$0xff] %v32
            %v34 = vld [vmem:[%s18 + $0x218] sm:$0xff]
            %35 = vst [vmem:[%s19 + $0x38] sm:$0xff] %v34
            %v36 = vld [vmem:[%s18 + $0x220] sm:$0xff]
            %37 = vst [vmem:[%s19 + $0x40] sm:$0xff] %v36
            %v38 = vld [vmem:[%s18 + $0x318] sm:$0xff]
            %39 = vst [vmem:[%s19 + $0x48] sm:$0xff] %v38
            %v40 = vld [vmem:[%s18 + $0x320] sm:$0xff]
            %41 = vst [vmem:[%s19 + $0x50] sm:$0xff] %v40
            %v42 = vld [vmem:[%s18 + $0x328] sm:$0xff]
            %43 = vst [vmem:[%s19 + $0x58] sm:$0xff] %v42
            %v44 = vld [vmem:[%s18 + $0x420] sm:$0xff]
            %45 = vst [vmem:[%s19 + $0x60] sm:$0xff] %v44
            %v46 = vld [vmem:[%s18 + $0x428] sm:$0xff]
            %47 = vst [vmem:[%s19 + $0x68] sm:$0xff] %v46
            %v48 = vld [vmem:[%s18 + $0x430] sm:$0xff]
            %49 = vst [vmem:[%s19 + $0x70] sm:$0xff] %v48
            %v50 = vld [vmem:[%s18 + $0x528] sm:$0xff]
            %51 = vst [vmem:[%s19 + $0x78] sm:$0xff] %v50
            %v52 = vld [vmem:[%s18 + $0x530] sm:$0xff]
            %53 = vst [vmem:[%s19 + $0x80] sm:$0xff] %v52
            %v54 = vld [vmem:[%s18 + $0x538] sm:$0xff]
            %55 = vst [vmem:[%s19 + $0x88] sm:$0xff] %v54
          $region18: #{yolo_loss_forward.1} parent=12 // loop_footer
            %s17 = sadd.s32 1, %s13
          $region19: #{yolo_loss_forward.1} parent=12 // loop_footer_branch
            %12 = sbr.rel target = $region15
          $region20: #{yolo_loss_forward.1} parent=12 // loop_exit
            _
        $region13: #{yolo_loss_forward.1} parent=8 // pred_fallthru
          _
        // Predicated region
        $region21: #{yolo_loss_forward.1} parent=8 // pred_check
          _
        $region22: #{yolo_loss_forward.1} parent=8 // pred_check_branch
          %57 = sbr.rel target = $region24
        $region23: #{yolo_loss_forward.1} parent=8 // pred_region
          _
        $region24: #{yolo_loss_forward.1} parent=8 // pred_fallthru
          _
      $region9: #{yolo_loss_forward.1} parent=4 // pred_fallthru
        _
      %58 = vnop
    $region5: #{yolo_loss_forward.1} parent=1 // pred_fallthru
      _
    // Predicated region
    $region25: #{yolo_loss_forward.1} parent=1 // pred_check
      _
    $region26: #{yolo_loss_forward.1} parent=1 // pred_check_branch
      %60 = sbr.rel (0) target = $region28
    $region27: #{yolo_loss_forward.1} parent=1 // pred_region
      _
    $region28: #{yolo_loss_forward.1} parent=1 // pred_fallthru
      _
    %v61 = vld [vmem:[#allocation2] sm:$0xff]
    %v62 = vld [vmem:[#allocation2 + $0x8] sm:$0xff]
    %v63 = vld [vmem:[#allocation2 + $0x10] sm:$0xff]
    %v64 = vld [vmem:[#allocation2 + $0x18] sm:$0xff]
    %v65 = vld [vmem:[#allocation2 + $0x20] sm:$0xff]
    %v66 = vld [vmem:[#allocation2 + $0x28] sm:$0xff]
    %v67 = vld [vmem:[#allocation2 + $0x30] sm:$0xff]
    %v68 = vld [vmem:[#allocation2 + $0x38] sm:$0xff]
    %v69 = vld [vmem:[#allocation2 + $0x40] sm:$0xff]
    %v70 = vld [vmem:[#allocation2 + $0x48] sm:$0xff]
    %v71 = vld [vmem:[#allocation2 + $0x50] sm:$0xff]
    %v72 = vld [vmem:[#allocation2 + $0x58] sm:$0xff]
    %v73 = vld [vmem:[#allocation2 + $0x60] sm:$0xff]
    %v74 = vld [vmem:[#allocation2 + $0x68] sm:$0xff]
    %v75 = vld [vmem:[#allocation2 + $0x70] sm:$0xff]
    %v76 = vld [vmem:[#allocation2 + $0x78] sm:$0xff]
    %v77 = vld [vmem:[#allocation2 + $0x80] sm:$0xff]
    %v78 = vld [vmem:[#allocation2 + $0x88] sm:$0xff]
    %v79 = vlaneseq
    %v80 = vand.u32 %v79, 127
    %v81 = vadd.s32 %v80, 128
    %v82 = vadd.s32 %v80, 256
    %v83 = vcvt.s32.f32 %v80
    %v84 = vcvt.s32.f32 %v81
    %v85 = vcvt.s32.f32 %v82
    %v86 = vmul.f32 %v83, 0.05
    %v87 = vmul.f32 %v84, 0.05
    %v88 = vmul.f32 %v85, 0.05
    %v89 = vfloor.f32 %v86
    %v90 = vfloor.f32 %v87
    %v91 = vfloor.f32 %v88
    %v92 = vmul.f32 %v89, 20.0
    %v93 = vmul.f32 %v90, 20.0
    %v94 = vmul.f32 %v91, 20.0
    %v95 = vsub.f32 %v83, %v92
    %v96 = vsub.f32 %v84, %v93
    %v97 = vsub.f32 %v85, %v94
    %v98 = vlaneseq
    %v99 = vshrl.u32 %v98, 7
    %vm100 = vcmp.eq.s32.totalorder %v99, 0
    %vm101 = vcmp.eq.s32.totalorder %v99, 1
    %v102 = vsel %vm101, 6.0, 14.34375
    %v103 = vsel %vm100, 4.4375, %v102
    %v104 = vsel %vm101, 7.59375, 12.53125
    %v105 = vsel %vm100, 3.4375, %v104
    %v106 = vxor.u32 %v61, 2147483648
    %v107 = vxor.u32 %v62, 2147483648
    %v108 = vxor.u32 %v63, 2147483648
    %v109 = vxor.u32 %v64, 2147483648
    %v110 = vxor.u32 %v65, 2147483648
    %v111 = vxor.u32 %v66, 2147483648
    %v112 = vxor.u32 %v67, 2147483648
    %v113 = vxor.u32 %v68, 2147483648
    %v114 = vxor.u32 %v69, 2147483648
    %v115 = vxor.u32 %v70, 2147483648
    %v116 = vxor.u32 %v71, 2147483648
    %v117 = vxor.u32 %v72, 2147483648
    %v118 = vxor.u32 %v73, 2147483648
    %v119 = vxor.u32 %v74, 2147483648
    %v120 = vxor.u32 %v75, 2147483648
    %v121 = vxor.u32 %v76, 2147483648
    %v122 = vxor.u32 %v77, 2147483648
    %v123 = vxor.u32 %v78, 2147483648
    %v124 = vmul.f32 %v106, 1.442695
    %v125 = vpow.pop %v124
    %v126 = vmul.f32 %v107, 1.442695
    %v127 = vpow.pop %v126
    %v128 = vmul.f32 %v108, 1.442695
    %v129 = vpow.pop %v128
    %v130 = vmul.f32 %v109, 1.442695
    %v131 = vpow.pop %v130
    %v132 = vmul.f32 %v110, 1.442695
    %v133 = vpow.pop %v132
    %v134 = vmul.f32 %v111, 1.442695
    %v135 = vpow.pop %v134
    %v136 = vmul.f32 %v112, 1.442695
    %v137 = vpow.pop %v136
    %v138 = vmul.f32 %v113, 1.442695
    %v139 = vpow.pop %v138
    %v140 = vmul.f32 %v114, 1.442695
    %v141 = vpow.pop %v140
    %v142 = vmul.f32 %v115, 1.442695
    %v143 = vpow.pop %v142
    %v144 = vmul.f32 %v116, 1.442695
    %v145 = vpow.pop %v144
    %v146 = vmul.f32 %v117, 1.442695
    %v147 = vpow.pop %v146
    %v148 = vmul.f32 %v118, 1.442695
    %v149 = vpow.pop %v148
    %v150 = vmul.f32 %v119, 1.442695
    %v151 = vpow.pop %v150
    %v152 = vmul.f32 %v120, 1.442695
    %v153 = vpow.pop %v152
    %v154 = vmul.f32 %v121, 1.442695
    %v155 = vpow.pop %v154
    %v156 = vmul.f32 %v122, 1.442695
    %v157 = vpow.pop %v156
    %v158 = vmul.f32 %v123, 1.442695
    %v159 = vpow.pop %v158
    %v160 = vadd.f32 %v125, 1.0
    %v161 = vadd.f32 %v127, 1.0
    %v162 = vadd.f32 %v129, 1.0
    %v163 = vadd.f32 %v131, 1.0
    %v164 = vadd.f32 %v133, 1.0
    %v165 = vadd.f32 %v135, 1.0
    %v166 = vadd.f32 %v137, 1.0
    %v167 = vadd.f32 %v139, 1.0
    %v168 = vadd.f32 %v141, 1.0
    %v169 = vadd.f32 %v143, 1.0
    %v170 = vadd.f32 %v145, 1.0
    %v171 = vadd.f32 %v147, 1.0
    %v172 = vadd.f32 %v149, 1.0
    %v173 = vadd.f32 %v151, 1.0
    %v174 = vadd.f32 %v153, 1.0
    %v175 = vadd.f32 %v155, 1.0
    %v176 = vadd.f32 %v157, 1.0
    %v177 = vadd.f32 %v159, 1.0
    %v178 = vrcp.pop %v160
    %v179 = vmul.f32 %v160, %v178
    %v180 = vsub.f32 1.0, %v179
    %v181 = vmul.f32 %v178, %v180
    %v182 = vadd.f32 %v178, %v181
    %vm183 = vweird.f32 %v160
    %vm184 = vweird.f32 %v178
    %vm185 = vmor %vm183, %vm184
    %v186 = vsel %vm185, %v178, %v182
    %v187 = vand.u32 2147483647, %v160
    %vm188 = vcmp.eq.f32.partialorder %v187, 8.507059e+37
    %v189 = vand.u32 %v160, 2147483648
    %v190 = vor.u32 1.1754944e-38, %v189
    %v191 = vsel %vm188, %v190, %v186
    %v192 = vmul.f32 1.0, %v191
    %v193 = vrcp.pop %v161
    %v194 = vmul.f32 %v161, %v193
    %v195 = vsub.f32 1.0, %v194
    %v196 = vmul.f32 %v193, %v195
    %v197 = vadd.f32 %v193, %v196
    %vm198 = vweird.f32 %v161
    %vm199 = vweird.f32 %v193
    %vm200 = vmor %vm198, %vm199
    %v201 = vsel %vm200, %v193, %v197
    %v202 = vand.u32 2147483647, %v161
    %vm203 = vcmp.eq.f32.partialorder %v202, 8.507059e+37
    %v204 = vand.u32 %v161, 2147483648
    %v205 = vor.u32 1.1754944e-38, %v204
    %v206 = vsel %vm203, %v205, %v201
    %v207 = vmul.f32 1.0, %v206
    %v208 = vrcp.pop %v162
    %v209 = vmul.f32 %v162, %v208
    %v210 = vsub.f32 1.0, %v209
    %v211 = vmul.f32 %v208, %v210
    %v212 = vadd.f32 %v208, %v211
    %vm213 = vweird.f32 %v162
    %vm214 = vweird.f32 %v208
    %vm215 = vmor %vm213, %vm214
    %v216 = vsel %vm215, %v208, %v212
    %v217 = vand.u32 2147483647, %v162
    %vm218 = vcmp.eq.f32.partialorder %v217, 8.507059e+37
    %v219 = vand.u32 %v162, 2147483648
    %v220 = vor.u32 1.1754944e-38, %v219
    %v221 = vsel %vm218, %v220, %v216
    %v222 = vmul.f32 1.0, %v221
    %v223 = vrcp.pop %v163
    %v224 = vmul.f32 %v163, %v223
    %v225 = vsub.f32 1.0, %v224
    %v226 = vmul.f32 %v223, %v225
    %v227 = vadd.f32 %v223, %v226
    %vm228 = vweird.f32 %v163
    %vm229 = vweird.f32 %v223
    %vm230 = vmor %vm228, %vm229
    %v231 = vsel %vm230, %v223, %v227
    %v232 = vand.u32 2147483647, %v163
    %vm233 = vcmp.eq.f32.partialorder %v232, 8.507059e+37
    %v234 = vand.u32 %v163, 2147483648
    %v235 = vor.u32 1.1754944e-38, %v234
    %v236 = vsel %vm233, %v235, %v231
    %v237 = vmul.f32 1.0, %v236
    %v238 = vrcp.pop %v164
    %v239 = vmul.f32 %v164, %v238
    %v240 = vsub.f32 1.0, %v239
    %v241 = vmul.f32 %v238, %v240
    %v242 = vadd.f32 %v238, %v241
    %vm243 = vweird.f32 %v164
    %vm244 = vweird.f32 %v238
    %vm245 = vmor %vm243, %vm244
    %v246 = vsel %vm245, %v238, %v242
    %v247 = vand.u32 2147483647, %v164
    %vm248 = vcmp.eq.f32.partialorder %v247, 8.507059e+37
    %v249 = vand.u32 %v164, 2147483648
    %v250 = vor.u32 1.1754944e-38, %v249
    %v251 = vsel %vm248, %v250, %v246
    %v252 = vmul.f32 1.0, %v251
    %v253 = vrcp.pop %v165
    %v254 = vmul.f32 %v165, %v253
    %v255 = vsub.f32 1.0, %v254
    %v256 = vmul.f32 %v253, %v255
    %v257 = vadd.f32 %v253, %v256
    %vm258 = vweird.f32 %v165
    %vm259 = vweird.f32 %v253
    %vm260 = vmor %vm258, %vm259
    %v261 = vsel %vm260, %v253, %v257
    %v262 = vand.u32 2147483647, %v165
    %vm263 = vcmp.eq.f32.partialorder %v262, 8.507059e+37
    %v264 = vand.u32 %v165, 2147483648
    %v265 = vor.u32 1.1754944e-38, %v264
    %v266 = vsel %vm263, %v265, %v261
    %v267 = vmul.f32 1.0, %v266
    %v268 = vrcp.pop %v166
    %v269 = vmul.f32 %v166, %v268
    %v270 = vsub.f32 1.0, %v269
    %v271 = vmul.f32 %v268, %v270
    %v272 = vadd.f32 %v268, %v271
    %vm273 = vweird.f32 %v166
    %vm274 = vweird.f32 %v268
    %vm275 = vmor %vm273, %vm274
    %v276 = vsel %vm275, %v268, %v272
    %v277 = vand.u32 2147483647, %v166
    %vm278 = vcmp.eq.f32.partialorder %v277, 8.507059e+37
    %v279 = vand.u32 %v166, 2147483648
    %v280 = vor.u32 1.1754944e-38, %v279
    %v281 = vsel %vm278, %v280, %v276
    %v282 = vmul.f32 1.0, %v281
    %v283 = vrcp.pop %v167
    %v284 = vmul.f32 %v167, %v283
    %v285 = vsub.f32 1.0, %v284
    %v286 = vmul.f32 %v283, %v285
    %v287 = vadd.f32 %v283, %v286
    %vm288 = vweird.f32 %v167
    %vm289 = vweird.f32 %v283
    %vm290 = vmor %vm288, %vm289
    %v291 = vsel %vm290, %v283, %v287
    %v292 = vand.u32 2147483647, %v167
    %vm293 = vcmp.eq.f32.partialorder %v292, 8.507059e+37
    %v294 = vand.u32 %v167, 2147483648
    %v295 = vor.u32 1.1754944e-38, %v294
    %v296 = vsel %vm293, %v295, %v291
    %v297 = vmul.f32 1.0, %v296
    %v298 = vrcp.pop %v168
    %v299 = vmul.f32 %v168, %v298
    %v300 = vsub.f32 1.0, %v299
    %v301 = vmul.f32 %v298, %v300
    %v302 = vadd.f32 %v298, %v301
    %vm303 = vweird.f32 %v168
    %vm304 = vweird.f32 %v298
    %vm305 = vmor %vm303, %vm304
    %v306 = vsel %vm305, %v298, %v302
    %v307 = vand.u32 2147483647, %v168
    %vm308 = vcmp.eq.f32.partialorder %v307, 8.507059e+37
    %v309 = vand.u32 %v168, 2147483648
    %v310 = vor.u32 1.1754944e-38, %v309
    %v311 = vsel %vm308, %v310, %v306
    %v312 = vmul.f32 1.0, %v311
    %v313 = vrcp.pop %v169
    %v314 = vmul.f32 %v169, %v313
    %v315 = vsub.f32 1.0, %v314
    %v316 = vmul.f32 %v313, %v315
    %v317 = vadd.f32 %v313, %v316
    %vm318 = vweird.f32 %v169
    %vm319 = vweird.f32 %v313
    %vm320 = vmor %vm318, %vm319
    %v321 = vsel %vm320, %v313, %v317
    %v322 = vand.u32 2147483647, %v169
    %vm323 = vcmp.eq.f32.partialorder %v322, 8.507059e+37
    %v324 = vand.u32 %v169, 2147483648
    %v325 = vor.u32 1.1754944e-38, %v324
    %v326 = vsel %vm323, %v325, %v321
    %v327 = vmul.f32 1.0, %v326
    %v328 = vrcp.pop %v170
    %v329 = vmul.f32 %v170, %v328
    %v330 = vsub.f32 1.0, %v329
    %v331 = vmul.f32 %v328, %v330
    %v332 = vadd.f32 %v328, %v331
    %vm333 = vweird.f32 %v170
    %vm334 = vweird.f32 %v328
    %vm335 = vmor %vm333, %vm334
    %v336 = vsel %vm335, %v328, %v332
    %v337 = vand.u32 2147483647, %v170
    %vm338 = vcmp.eq.f32.partialorder %v337, 8.507059e+37
    %v339 = vand.u32 %v170, 2147483648
    %v340 = vor.u32 1.1754944e-38, %v339
    %v341 = vsel %vm338, %v340, %v336
    %v342 = vmul.f32 1.0, %v341
    %v343 = vrcp.pop %v171
    %v344 = vmul.f32 %v171, %v343
    %v345 = vsub.f32 1.0, %v344
    %v346 = vmul.f32 %v343, %v345
    %v347 = vadd.f32 %v343, %v346
    %vm348 = vweird.f32 %v171
    %vm349 = vweird.f32 %v343
    %vm350 = vmor %vm348, %vm349
    %v351 = vsel %vm350, %v343, %v347
    %v352 = vand.u32 2147483647, %v171
    %vm353 = vcmp.eq.f32.partialorder %v352, 8.507059e+37
    %v354 = vand.u32 %v171, 2147483648
    %v355 = vor.u32 1.1754944e-38, %v354
    %v356 = vsel %vm353, %v355, %v351
    %v357 = vmul.f32 1.0, %v356
    %v358 = vrcp.pop %v172
    %v359 = vmul.f32 %v172, %v358
    %v360 = vsub.f32 1.0, %v359
    %v361 = vmul.f32 %v358, %v360
    %v362 = vadd.f32 %v358, %v361
    %vm363 = vweird.f32 %v172
    %vm364 = vweird.f32 %v358
    %vm365 = vmor %vm363, %vm364
    %v366 = vsel %vm365, %v358, %v362
    %v367 = vand.u32 2147483647, %v172
    %vm368 = vcmp.eq.f32.partialorder %v367, 8.507059e+37
    %v369 = vand.u32 %v172, 2147483648
    %v370 = vor.u32 1.1754944e-38, %v369
    %v371 = vsel %vm368, %v370, %v366
    %v372 = vmul.f32 1.0, %v371
    %v373 = vrcp.pop %v173
    %v374 = vmul.f32 %v173, %v373
    %v375 = vsub.f32 1.0, %v374
    %v376 = vmul.f32 %v373, %v375
    %v377 = vadd.f32 %v373, %v376
    %vm378 = vweird.f32 %v173
    %vm379 = vweird.f32 %v373
    %vm380 = vmor %vm378, %vm379
    %v381 = vsel %vm380, %v373, %v377
    %v382 = vand.u32 2147483647, %v173
    %vm383 = vcmp.eq.f32.partialorder %v382, 8.507059e+37
    %v384 = vand.u32 %v173, 2147483648
    %v385 = vor.u32 1.1754944e-38, %v384
    %v386 = vsel %vm383, %v385, %v381
    %v387 = vmul.f32 1.0, %v386
    %v388 = vrcp.pop %v174
    %v389 = vmul.f32 %v174, %v388
    %v390 = vsub.f32 1.0, %v389
    %v391 = vmul.f32 %v388, %v390
    %v392 = vadd.f32 %v388, %v391
    %vm393 = vweird.f32 %v174
    %vm394 = vweird.f32 %v388
    %vm395 = vmor %vm393, %vm394
    %v396 = vsel %vm395, %v388, %v392
    %v397 = vand.u32 2147483647, %v174
    %vm398 = vcmp.eq.f32.partialorder %v397, 8.507059e+37
    %v399 = vand.u32 %v174, 2147483648
    %v400 = vor.u32 1.1754944e-38, %v399
    %v401 = vsel %vm398, %v400, %v396
    %v402 = vmul.f32 1.0, %v401
    %v403 = vrcp.pop %v175
    %v404 = vmul.f32 %v175, %v403
    %v405 = vsub.f32 1.0, %v404
    %v406 = vmul.f32 %v403, %v405
    %v407 = vadd.f32 %v403, %v406
    %vm408 = vweird.f32 %v175
    %vm409 = vweird.f32 %v403
    %vm410 = vmor %vm408, %vm409
    %v411 = vsel %vm410, %v403, %v407
    %v412 = vand.u32 2147483647, %v175
    %vm413 = vcmp.eq.f32.partialorder %v412, 8.507059e+37
    %v414 = vand.u32 %v175, 2147483648
    %v415 = vor.u32 1.1754944e-38, %v414
    %v416 = vsel %vm413, %v415, %v411
    %v417 = vmul.f32 1.0, %v416
    %v418 = vrcp.pop %v176
    %v419 = vmul.f32 %v176, %v418
    %v420 = vsub.f32 1.0, %v419
    %v421 = vmul.f32 %v418, %v420
    %v422 = vadd.f32 %v418, %v421
    %vm423 = vweird.f32 %v176
    %vm424 = vweird.f32 %v418
    %vm425 = vmor %vm423, %vm424
    %v426 = vsel %vm425, %v418, %v422
    %v427 = vand.u32 2147483647, %v176
    %vm428 = vcmp.eq.f32.partialorder %v427, 8.507059e+37
    %v429 = vand.u32 %v176, 2147483648
    %v430 = vor.u32 1.1754944e-38, %v429
    %v431 = vsel %vm428, %v430, %v426
    %v432 = vmul.f32 1.0, %v431
    %v433 = vrcp.pop %v177
    %v434 = vmul.f32 %v177, %v433
    %v435 = vsub.f32 1.0, %v434
    %v436 = vmul.f32 %v433, %v435
    %v437 = vadd.f32 %v433, %v436
    %vm438 = vweird.f32 %v177
    %vm439 = vweird.f32 %v433
    %vm440 = vmor %vm438, %vm439
    %v441 = vsel %vm440, %v433, %v437
    %v442 = vand.u32 2147483647, %v177
    %vm443 = vcmp.eq.f32.partialorder %v442, 8.507059e+37
    %v444 = vand.u32 %v177, 2147483648
    %v445 = vor.u32 1.1754944e-38, %v444
    %v446 = vsel %vm443, %v445, %v441
    %v447 = vmul.f32 1.0, %v446
    %v448 = vadd.f32 %v192, %v95
    %v449 = vadd.f32 %v207, %v96
    %v450 = vadd.f32 %v222, %v97
    %v451 = vadd.f32 %v237, %v95
    %v452 = vadd.f32 %v252, %v96
    %v453 = vadd.f32 %v267, %v97
    %v454 = vadd.f32 %v282, %v95
    %v455 = vadd.f32 %v297, %v96
    %v456 = vadd.f32 %v312, %v97
    %v457 = vadd.f32 %v327, %v95
    %v458 = vadd.f32 %v342, %v96
    %v459 = vadd.f32 %v357, %v97
    %v460 = vadd.f32 %v372, %v95
    %v461 = vadd.f32 %v387, %v96
    %v462 = vadd.f32 %v402, %v97
    %v463 = vadd.f32 %v417, %v95
    %v464 = vadd.f32 %v432, %v96
    %v465 = vadd.f32 %v447, %v97
    %v484 = vrot.slane %v449, 4
    %v485 = vrot.slane %v452, 4
    %v486 = vrot.slane %v455, 4
    %v487 = vrot.slane %v458, 4
    %v488 = vrot.slane %v461, 4
    %v489 = vrot.slane %v464, 4
    %vm490 = vcmask 1043456
    %v491 = vsel %vm490, %v448, %v484
    %v492 = vsel %vm490, %v451, %v485
    %v493 = vsel %vm490, %v454, %v486
    %v494 = vsel %vm490, %v457, %v487
    %v495 = vsel %vm490, %v460, %v488
    %v496 = vsel %vm490, %v463, %v489
    %v497 = vrot.slane %v492, 7
    %vm498 = vcmask 1041409
    %v499 = vsel %vm498, %v497, %v491
    %vm500 = vcmask 1045509
    %v501 = vsel %vm500, %v497, %v499
    %v502 = vrot.slane %v493, 6
    %vm503 = vcmask 1042434
    %v504 = vsel %vm503, %v502, %v501
    %vm505 = vcmask 1046534
    %v506 = vsel %vm505, %v502, %v504
    %v507 = vrot.slane %v453, 7
    %v508 = vsel %vm498, %v507, %v450
    %v509 = vsel %vm500, %v507, %v508
    %v510 = vrot.slane %v456, 6
    %v511 = vsel %vm503, %v510, %v509
    %v512 = vsel %vm505, %v510, %v511
    %v513 = vrot.slane %v495, 7
    %v514 = vsel %vm498, %v513, %v494
    %v515 = vsel %vm500, %v513, %v514
    %v516 = vrot.slane %v496, 6
    %v517 = vsel %vm503, %v516, %v515
    %v518 = vsel %vm505, %v516, %v517
    %v519 = vrot.slane %v462, 7
    %v520 = vsel %vm498, %v519, %v459
    %v521 = vsel %vm500, %v519, %v520
    %v522 = vrot.slane %v465, 6
    %v523 = vsel %vm503, %v522, %v521
    %v524 = vsel %vm505, %v522, %v523
    %529 = vst [vmem:[%s1] sm:$0x77] %v506
    %vm530 = vcmask 26624
    %531 = vst.msk [vmem:[%s1 + $0x8] sm:$0x7] %vm530, %v512
    %532 = vst [vmem:[%s1 + $0xc] sm:$0x77] %v518
    %533 = vst.msk [vmem:[%s1 + $0x14] sm:$0x7] %vm530, %v524
    %v534 = vadd.f32 %v192, %v89
    %v535 = vadd.f32 %v207, %v90
    %v536 = vadd.f32 %v222, %v91
    %v537 = vadd.f32 %v237, %v89
    %v538 = vadd.f32 %v252, %v90
    %v539 = vadd.f32 %v267, %v91
    %v540 = vadd.f32 %v282, %v89
    %v541 = vadd.f32 %v297, %v90
    %v542 = vadd.f32 %v312, %v91
    %v543 = vadd.f32 %v327, %v89
    %v544 = vadd.f32 %v342, %v90
    %v545 = vadd.f32 %v357, %v91
    %v546 = vadd.f32 %v372, %v89
    %v547 = vadd.f32 %v387, %v90
    %v548 = vadd.f32 %v402, %v91
    %v549 = vadd.f32 %v417, %v89
    %v550 = vadd.f32 %v432, %v90
    %v551 = vadd.f32 %v447, %v91
    %v570 = vrot.slane %v535, 4
    %v571 = vrot.slane %v538, 4
    %v572 = vrot.slane %v541, 4
    %v573 = vrot.slane %v544, 4
    %v574 = vrot.slane %v547, 4
    %v575 = vrot.slane %v550, 4
    %v576 = vsel %vm490, %v534, %v570
    %v577 = vsel %vm490, %v537, %v571
    %v578 = vsel %vm490, %v540, %v572
    %v579 = vsel %vm490, %v543, %v573
    %v580 = vsel %vm490, %v546, %v574
    %v581 = vsel %vm490, %v549, %v575
    %v582 = vrot.slane %v576, 1
    %v583 = vsel %vm498, %v577, %v582
    %v584 = vsel %vm500, %v577, %v583
    %v585 = vrot.slane %v578, 7
    %v586 = vsel %vm503, %v585, %v584
    %v587 = vsel %vm505, %v585, %v586
    %v588 = vrot.slane %v536, 1
    %v589 = vsel %vm498, %v539, %v588
    %v590 = vsel %vm500, %v539, %v589
    %v591 = vrot.slane %v542, 7
    %v592 = vsel %vm503, %v591, %v590
    %v593 = vsel %vm505, %v591, %v592
    %v594 = vrot.slane %v579, 1
    %v595 = vsel %vm498, %v580, %v594
    %v596 = vsel %vm500, %v580, %v595
    %v597 = vrot.slane %v581, 7
    %v598 = vsel %vm503, %v597, %v596
    %v599 = vsel %vm505, %v597, %v598
    %v600 = vrot.slane %v545, 1
    %v601 = vsel %vm498, %v548, %v600
    %v602 = vsel %vm500, %v548, %v601
    %v603 = vrot.slane %v551, 7
    %v604 = vsel %vm503, %v603, %v602
    %v605 = vsel %vm505, %v603, %v604
    %s610 = scalar_lea.vmem %s1, 24
    %611 = vst [vmem:[%s610] sm:$0x77] %v587
    %612 = vst.msk [vmem:[%s610 + $0x8] sm:$0x7] %vm530, %v593
    %613 = vst [vmem:[%s610 + $0xc] sm:$0x77] %v599
    %614 = vst.msk [vmem:[%s610 + $0x14] sm:$0x7] %vm530, %v605
    %v615 = vmul.f32 %v61, 1.442695
    %v616 = vpow.pop %v615
    %v617 = vmul.f32 %v62, 1.442695
    %v618 = vpow.pop %v617
    %v619 = vmul.f32 %v63, 1.442695
    %v620 = vpow.pop %v619
    %v621 = vmul.f32 %v64, 1.442695
    %v622 = vpow.pop %v621
    %v623 = vmul.f32 %v65, 1.442695
    %v624 = vpow.pop %v623
    %v625 = vmul.f32 %v66, 1.442695
    %v626 = vpow.pop %v625
    %v627 = vmul.f32 %v67, 1.442695
    %v628 = vpow.pop %v627
    %v629 = vmul.f32 %v68, 1.442695
    %v630 = vpow.pop %v629
    %v631 = vmul.f32 %v69, 1.442695
    %v632 = vpow.pop %v631
    %v633 = vmul.f32 %v70, 1.442695
    %v634 = vpow.pop %v633
    %v635 = vmul.f32 %v71, 1.442695
    %v636 = vpow.pop %v635
    %v637 = vmul.f32 %v72, 1.442695
    %v638 = vpow.pop %v637
    %v639 = vmul.f32 %v73, 1.442695
    %v640 = vpow.pop %v639
    %v641 = vmul.f32 %v74, 1.442695
    %v642 = vpow.pop %v641
    %v643 = vmul.f32 %v75, 1.442695
    %v644 = vpow.pop %v643
    %v645 = vmul.f32 %v76, 1.442695
    %v646 = vpow.pop %v645
    %v647 = vmul.f32 %v77, 1.442695
    %v648 = vpow.pop %v647
    %v649 = vmul.f32 %v78, 1.442695
    %v650 = vpow.pop %v649
    %v652 = vrot.slane %v103, 6
    %v653 = vrot.slane %v103, 7
    %v657 = vmul.f32 %v616, %v652
    %v658 = vmul.f32 %v618, %v652
    %v659 = vmul.f32 %v620, %v652
    %v660 = vmul.f32 %v622, %v653
    %v661 = vmul.f32 %v624, %v653
    %v662 = vmul.f32 %v626, %v653
    %v663 = vmul.f32 %v628, %v103
    %v664 = vmul.f32 %v630, %v103
    %v665 = vmul.f32 %v632, %v103
    %v666 = vmul.f32 %v634, %v652
    %v667 = vmul.f32 %v636, %v652
    %v668 = vmul.f32 %v638, %v652
    %v669 = vmul.f32 %v640, %v653
    %v670 = vmul.f32 %v642, %v653
    %v671 = vmul.f32 %v644, %v653
    %v672 = vmul.f32 %v646, %v103
    %v673 = vmul.f32 %v648, %v103
    %v674 = vmul.f32 %v650, %v103
    %v693 = vrot.slane %v658, 4
    %v694 = vrot.slane %v661, 4
    %v695 = vrot.slane %v664, 4
    %v696 = vrot.slane %v667, 4
    %v697 = vrot.slane %v670, 4
    %v698 = vrot.slane %v673, 4
    %v699 = vsel %vm490, %v657, %v693
    %v700 = vsel %vm490, %v660, %v694
    %v701 = vsel %vm490, %v663, %v695
    %v702 = vsel %vm490, %v666, %v696
    %v703 = vsel %vm490, %v669, %v697
    %v704 = vsel %vm490, %v672, %v698
    %v705 = vrot.slane %v699, 2
    %v706 = vrot.slane %v700, 1
    %v707 = vsel %vm498, %v706, %v705
    %v708 = vsel %vm500, %v706, %v707
    %v709 = vsel %vm503, %v701, %v708
    %v710 = vsel %vm505, %v701, %v709
    %v711 = vrot.slane %v659, 2
    %v712 = vrot.slane %v662, 1
    %v713 = vsel %vm498, %v712, %v711
    %v714 = vsel %vm500, %v712, %v713
    %v715 = vsel %vm503, %v665, %v714
    %v716 = vsel %vm505, %v665, %v715
    %v717 = vrot.slane %v702, 2
    %v718 = vrot.slane %v703, 1
    %v719 = vsel %vm498, %v718, %v717
    %v720 = vsel %vm500, %v718, %v719
    %v721 = vsel %vm503, %v704, %v720
    %v722 = vsel %vm505, %v704, %v721
    %v723 = vrot.slane %v668, 2
    %v724 = vrot.slane %v671, 1
    %v725 = vsel %vm498, %v724, %v723
    %v726 = vsel %vm500, %v724, %v725
    %v727 = vsel %vm503, %v674, %v726
    %v728 = vsel %vm505, %v674, %v727
    %s733 = scalar_lea.vmem %s1, 48
    %734 = vst [vmem:[%s733] sm:$0x77] %v710
    %735 = vst.msk [vmem:[%s733 + $0x8] sm:$0x7] %vm530, %v716
    %736 = vst [vmem:[%s733 + $0xc] sm:$0x77] %v722
    %737 = vst.msk [vmem:[%s733 + $0x14] sm:$0x7] %vm530, %v728
    %v739 = vrot.slane %v105, 5
    %v740 = vrot.slane %v105, 6
    %v741 = vrot.slane %v105, 7
    %v745 = vmul.f32 %v616, %v739
    %v746 = vmul.f32 %v618, %v739
    %v747 = vmul.f32 %v620, %v739
    %v748 = vmul.f32 %v622, %v740
    %v749 = vmul.f32 %v624, %v740
    %v750 = vmul.f32 %v626, %v740
    %v751 = vmul.f32 %v628, %v741
    %v752 = vmul.f32 %v630, %v741
    %v753 = vmul.f32 %v632, %v741
    %v754 = vmul.f32 %v634, %v739
    %v755 = vmul.f32 %v636, %v739
    %v756 = vmul.f32 %v638, %v739
    %v757 = vmul.f32 %v640, %v740
    %v758 = vmul.f32 %v642, %v740
    %v759 = vmul.f32 %v644, %v740
    %v760 = vmul.f32 %v646, %v741
    %v761 = vmul.f32 %v648, %v741
    %v762 = vmul.f32 %v650, %v741
    %v781 = vrot.slane %v746, 4
    %v782 = vrot.slane %v749, 4
    %v783 = vrot.slane %v752, 4
    %v784 = vrot.slane %v755, 4
    %v785 = vrot.slane %v758, 4
    %v786 = vrot.slane %v761, 4
    %v787 = vsel %vm490, %v745, %v781
    %v788 = vsel %vm490, %v748, %v782
    %v789 = vsel %vm490, %v751, %v783
    %v790 = vsel %vm490, %v754, %v784
    %v791 = vsel %vm490, %v757, %v785
    %v792 = vsel %vm490, %v760, %v786
    %v793 = vrot.slane %v787, 3
    %v794 = vrot.slane %v788, 2
    %v795 = vsel %vm498, %v794, %v793
    %v796 = vsel %vm500, %v794, %v795
    %v797 = vrot.slane %v789, 1
    %v798 = vsel %vm503, %v797, %v796
    %v799 = vsel %vm505, %v797, %v798
    %v800 = vrot.slane %v747, 3
    %v801 = vrot.slane %v750, 2
    %v802 = vsel %vm498, %v801, %v800
    %v803 = vsel %vm500, %v801, %v802
    %v804 = vrot.slane %v753, 1
    %v805 = vsel %vm503, %v804, %v803
    %v806 = vsel %vm505, %v804, %v805
    %v807 = vrot.slane %v790, 3
    %v808 = vrot.slane %v791, 2
    %v809 = vsel %vm498, %v808, %v807
    %v810 = vsel %vm500, %v808, %v809
    %v811 = vrot.slane %v792, 1
    %v812 = vsel %vm503, %v811, %v810
    %v813 = vsel %vm505, %v811, %v812
    %v814 = vrot.slane %v756, 3
    %v815 = vrot.slane %v759, 2
    %v816 = vsel %vm498, %v815, %v814
    %v817 = vsel %vm500, %v815, %v816
    %v818 = vrot.slane %v762, 1
    %v819 = vsel %vm503, %v818, %v817
    %v820 = vsel %vm505, %v818, %v819
    %s825 = scalar_lea.vmem %s1, 72
    %826 = vst [vmem:[%s825] sm:$0x77] %v799
    %827 = vst.msk [vmem:[%s825 + $0x8] sm:$0x7] %vm530, %v806
    %828 = vst [vmem:[%s825 + $0xc] sm:$0x77] %v813
    %829 = vst.msk [vmem:[%s825 + $0x14] sm:$0x7] %vm530, %v820
    // Predicated region
    $region29: #{yolo_loss_forward.1} parent=1 // pred_check
      _
    $region30: #{yolo_loss_forward.1} parent=1 // pred_check_branch
      %831 = sbr.rel (0) target = $region32
    $region31: #{yolo_loss_forward.1} parent=1 // pred_region
      _
    $region32: #{yolo_loss_forward.1} parent=1 // pred_fallthru
      _
    // Predicated region
    $region33: #{yolo_loss_forward.1} parent=1 // pred_check
      _
    $region34: #{yolo_loss_forward.1} parent=1 // pred_check_branch
      %833 = sbr.rel (0) target = $region36
    $region35: #{yolo_loss_forward.1} parent=1 // pred_region
      _
    $region36: #{yolo_loss_forward.1} parent=1 // pred_fallthru
      _

</llo_original>
